<compile_context>
chip_gen: v7x
topology: tpu7x:2x2x1
jax: 0.10.0
libtpu: 0.0.40
codegen_flags: <defaults>
</compile_context>

<pallas_src>
import jax
import jax.numpy as jnp
from jax import lax
from jax.experimental import pallas as pl
from jax.experimental.pallas import tpu as pltpu


LATENT_DIM = 128
_LANE = 128
# Keep well under the smallest scoped-VMEM default (v5e: 16 MiB) so the
# 2-deep pipeline survives on every generation without flag tweaking.
_VMEM_BUDGET_BYTES = 12 * 1024 * 1024


def _round_up(n, m):
    return ((n + m - 1) // m) * m


def _softplus(x):
    # numerically-stable softplus, matches F.softplus semantics
    return jnp.maximum(x, 0.0) + jnp.log1p(jnp.exp(-jnp.abs(x)))


def _sigmoid(x):
    return 1.0 / (1.0 + jnp.exp(-x))


def zinb_encoder_kernel(x_ref, w1_ref, b1_ref, w2_ref, b2_ref, out_ref):
    # hidden layer: (tm, K) @ (K, 128) on the MXU, f32 accumulation, + bias, relu
    h = jnp.dot(x_ref[...], w1_ref[...], preferred_element_type=jnp.float32)
    h = jnp.maximum(h + b1_ref[...], 0.0)                      # (tm, 128) f32

    # packed heads, already transposed: (3, 128) . (tm, 128)^T -> (3, tm)
    # rows are [pi, mu, theta]; result is lane-dense (tm lanes per row).
    z = lax.dot_general(
        w2_ref[...], h,
        dimension_numbers=(((1,), (1,)), ((), ())),
        preferred_element_type=jnp.float32)
    z = z + b2_ref[...]                                        # (3, tm)

    # activation epilogue on full-lane vregs; select per-row transform.
    row = lax.broadcasted_iota(jnp.int32, z.shape, 0)
    sp = _softplus(z)
    pi = _sigmoid(jnp.clip(z, -10.0, 10.0))
    out = jnp.where(row == 0, pi,
          jnp.where(row == 1, jnp.clip(sp, 1e-5, 10.0),        # mu
                              jnp.clip(sp, 1e-4, 10.0)))       # theta

    out_ref[...] = out.astype(out_ref.dtype)                   # unmasked lane-dense store


def zinb_encoder(x, w1, b1, w2_rows, b2, *, tm=512, compute_dtype=jnp.bfloat16):
    """x: (N, D) float32.
    w1: (D, 128), b1: (1, 128), w2_rows: (3, 128) rows=[pi, mu, theta], b2: (3, 1).
    Returns (pi, mu, theta), each (N, 1) float32."""
    N, D = x.shape
    assert w1.shape == (D, LATENT_DIM)
    assert b1.shape == (1, LATENT_DIM)
    assert w2_rows.shape == (3, LATENT_DIM)
    assert b2.shape == (3, 1)

    # Pad the contraction dim to a lane multiple (zeros contribute nothing).
    K = _round_up(D, _LANE)
    if K != D:
        x = jnp.pad(x, ((0, 0), (0, K - D)))
        w1 = jnp.pad(w1, ((0, K - D), (0, 0)))
    # TODO(synk): for very large input_dim, add a K grid axis over D instead of
    # shrinking tm; not needed at these sizes.

    x_c = x.astype(compute_dtype)
    w1_c = w1.astype(compute_dtype)
    b1_f = b1.astype(jnp.float32)
    w2_f = w2_rows.astype(jnp.float32)
    b2_f = b2.astype(jnp.float32)

    # Tile selection: multiple of 128 (lane-dense (3, tm) output block),
    # capped so double-buffered x + resident W1 + output stays in budget.
    itm = jnp.dtype(compute_dtype).itemsize
    tm_eff = min(_round_up(tm, _LANE), _round_up(N, _LANE))
    const_bytes = 2 * K * LATENT_DIM * itm + 2 * LATENT_DIM * 4 + 3 * 4
    while tm_eff > _LANE and (
            2 * tm_eff * K * itm + 2 * 3 * tm_eff * 4 + const_bytes
            > _VMEM_BUDGET_BYTES):
        tm_eff -= _LANE

    Np = _round_up(N, tm_eff)
    if Np != N:
        x_c = jnp.pad(x_c, ((0, Np - N), (0, 0)))

    grid = (Np // tm_eff,)

    out = pl.pallas_call(
        zinb_encoder_kernel,
        out_shape=jax.ShapeDtypeStruct((3, Np), jnp.float32),
        grid_spec=pltpu.PrefetchScalarGridSpec(
            num_scalar_prefetch=0,
            grid=grid,
            in_specs=[
                pl.BlockSpec((tm_eff, K),         lambda i: (i, 0)),  # x tile
                pl.BlockSpec((K, LATENT_DIM),     lambda i: (0, 0)),  # W1 (resident)
                pl.BlockSpec((1, LATENT_DIM),     lambda i: (0, 0)),  # b1
                pl.BlockSpec((3, LATENT_DIM),     lambda i: (0, 0)),  # packed head W (3,128)
                pl.BlockSpec((3, 1),              lambda i: (0, 0)),  # packed head b (3,1)
            ],
            out_specs=pl.BlockSpec((3, tm_eff), lambda i: (0, i)),    # lane-dense (3, tm)
        ),
        compiler_params=pltpu.CompilerParams(
            dimension_semantics=("parallel",)),
    )(x_c, w1_c, b1_f, w2_f, b2_f)

    pi = out[0, :N].reshape(N, 1)
    mu = out[1, :N].reshape(N, 1)
    theta = out[2, :N].reshape(N, 1)
    return pi, mu, theta


def reference(x, w1, b1, w2_rows, b2, compute_dtype=jnp.bfloat16):
    """Pure-JAX reference matching the kernel's bf16-operand / f32-accum matmul."""
    h = jax.nn.relu(
        jnp.dot(x.astype(compute_dtype), w1.astype(compute_dtype),
                preferred_element_type=jnp.float32) + b1)
    z = h @ w2_rows.T + b2.T                      # (N, 3), cols [pi, mu, theta]
    pi = jax.nn.sigmoid(jnp.clip(z[:, 0:1], -10.0, 10.0))
    mu = jnp.clip(jax.nn.softplus(z[:, 1:2]), 1e-5, 10.0)
    theta = jnp.clip(jax.nn.softplus(z[:, 2:3]), 1e-4, 10.0)
    return pi, mu, theta


if __name__ == "__main__":
    key = jax.random.PRNGKey(0)
    kx, k1, k2, k3, k4 = jax.random.split(key, 5)

    # Small shapes; N deliberately not a multiple of the tile, D not a multiple
    # of 128, to exercise the padding paths.
    N, input_dim = 300, 64
    x = jax.random.normal(kx, (N, input_dim), jnp.float32)

    # layer1: Linear(input_dim, 128); heads packed as rows [pi, mu, theta]
    w1 = jax.random.normal(k1, (input_dim, LATENT_DIM), jnp.float32) / jnp.sqrt(input_dim)
    b1 = jax.random.normal(k2, (1, LATENT_DIM), jnp.float32) * 0.01
    w2_rows = jax.random.normal(k3, (3, LATENT_DIM), jnp.float32) / jnp.sqrt(LATENT_DIM)
    b2 = jax.random.normal(k4, (3, 1), jnp.float32) * 0.01

    pi, mu, theta = zinb_encoder(x, w1, b1, w2_rows, b2)
    jax.block_until_ready((pi, mu, theta))

    pi_r, mu_r, theta_r = reference(x, w1, b1, w2_rows, b2)
    assert pi.shape == (N, 1) and mu.shape == (N, 1) and theta.shape == (N, 1)
    assert jnp.allclose(pi, pi_r, atol=1e-3), float(jnp.max(jnp.abs(pi - pi_r)))
    assert jnp.allclose(mu, mu_r, atol=1e-3), float(jnp.max(jnp.abs(mu - mu_r)))
    assert jnp.allclose(theta, theta_r, atol=1e-3), float(jnp.max(jnp.abs(theta - theta_r)))

    print("KERNEL_OK")
</pallas_src>

<mosaic_0001>
module attributes {stable_mosaic.version = 11 : i64} {
  func.func @zinb_encoder_kernel(%arg0: i32, %arg1: memref<384x128xbf16, #tpu.memory_space<vmem>>, %arg2: memref<128x128xbf16, #tpu.memory_space<vmem>>, %arg3: memref<1x128xf32, #tpu.memory_space<vmem>>, %arg4: memref<3x128xf32, #tpu.memory_space<vmem>>, %arg5: memref<3x1xf32, #tpu.memory_space<vmem>>, %arg6: memref<3x384xf32, #tpu.memory_space<vmem>>) attributes {dimension_semantics = [#tpu.dimension_semantics<parallel>], iteration_bounds = array<i64: 1>, scalar_prefetch = 0 : i64, scratch_operands = 0 : i64, tpu.core_type = #tpu.core_type<tc>, window_params = [{transform_indices = @transform_0, window_bounds = array<i64: 384, 128>}, {pipeline_mode = #tpu.pipeline_mode<synchronous>, transform_indices = @transform_1, window_bounds = array<i64: 128, 128>}, {pipeline_mode = #tpu.pipeline_mode<synchronous>, transform_indices = @transform_2, window_bounds = array<i64: 1, 128>}, {pipeline_mode = #tpu.pipeline_mode<synchronous>, transform_indices = @transform_3, window_bounds = array<i64: 3, 128>}, {pipeline_mode = #tpu.pipeline_mode<synchronous>, transform_indices = @transform_4, window_bounds = array<i64: 3, 1>}, {transform_indices = @transform_5, window_bounds = array<i64: 3, 384>}]} {
    %c0 = arith.constant 0 : index
    %c0_0 = arith.constant 0 : index
    %0 = vector.load %arg1[%c0, %c0_0] : memref<384x128xbf16, #tpu.memory_space<vmem>>, vector<384x128xbf16>
    %c0_1 = arith.constant 0 : index
    %c0_2 = arith.constant 0 : index
    %1 = vector.load %arg2[%c0_1, %c0_2] : memref<128x128xbf16, #tpu.memory_space<vmem>>, vector<128x128xbf16>
    %cst = arith.constant dense<0.000000e+00> : vector<384x128xf32>
    %2 = tpu.matmul %0, %1, %cst {dimension_numbers = #tpu.dot_dimension_numbers<[1], [0], [0], [1], [0, 0, 1, 1], [], []>} : vector<384x128xbf16>, vector<128x128xbf16>, vector<384x128xf32> -> vector<384x128xf32>
    %c0_3 = arith.constant 0 : index
    %c0_4 = arith.constant 0 : index
    %3 = vector.load %arg3[%c0_3, %c0_4] : memref<1x128xf32, #tpu.memory_space<vmem>>, vector<1x128xf32>
    %4 = vector.broadcast %3 : vector<1x128xf32> to vector<384x128xf32>
    %5 = arith.addf %2, %4 : vector<384x128xf32>
    %cst_5 = arith.constant 0.000000e+00 : f32
    %6 = vector.broadcast %cst_5 : f32 to vector<384x128xf32>
    %7 = arith.maximumf %5, %6 : vector<384x128xf32>
    %c0_6 = arith.constant 0 : index
    %c0_7 = arith.constant 0 : index
    %8 = vector.load %arg4[%c0_6, %c0_7] : memref<3x128xf32, #tpu.memory_space<vmem>>, vector<3x128xf32>
    %cst_8 = arith.constant dense<0.000000e+00> : vector<3x384xf32>
    %9 = tpu.matmul %8, %7, %cst_8 {dimension_numbers = #tpu.dot_dimension_numbers<[1], [1], [0], [0], [0, 0, 1, 0], [], []>} : vector<3x128xf32>, vector<384x128xf32>, vector<3x384xf32> -> vector<3x384xf32>
    %c0_9 = arith.constant 0 : index
    %c0_10 = arith.constant 0 : index
    %10 = vector.load %arg5[%c0_9, %c0_10] : memref<3x1xf32, #tpu.memory_space<vmem>>, vector<3x1xf32>
    %11 = vector.broadcast %10 : vector<3x1xf32> to vector<3x384xf32>
    %12 = arith.addf %9, %11 : vector<3x384xf32>
    %13 = tpu.iota {dimensions = array<i32: 0>} : vector<3x384xi32>
    %cst_11 = arith.constant 0.000000e+00 : f32
    %14 = vector.broadcast %cst_11 : f32 to vector<3x384xf32>
    %15 = arith.maximumf %12, %14 : vector<3x384xf32>
    %16 = math.absf %12 : vector<3x384xf32>
    %cst_12 = arith.constant 0.000000e+00 : f32
    %17 = vector.broadcast %cst_12 : f32 to vector<3x384xf32>
    %18 = arith.subf %17, %16 : vector<3x384xf32>
    %19 = math.exp %18 : vector<3x384xf32>
    %20 = math.log1p %19 : vector<3x384xf32>
    %21 = arith.addf %15, %20 : vector<3x384xf32>
    %cst_13 = arith.constant -1.000000e+01 : f32
    %cst_14 = arith.constant 1.000000e+01 : f32
    %22 = vector.broadcast %cst_13 : f32 to vector<3x384xf32>
    %23 = arith.maximumf %22, %12 : vector<3x384xf32>
    %24 = vector.broadcast %cst_14 : f32 to vector<3x384xf32>
    %25 = arith.minimumf %24, %23 : vector<3x384xf32>
    %cst_15 = arith.constant 0.000000e+00 : f32
    %26 = vector.broadcast %cst_15 : f32 to vector<3x384xf32>
    %27 = arith.subf %26, %25 : vector<3x384xf32>
    %28 = math.exp %27 : vector<3x384xf32>
    %cst_16 = arith.constant 1.000000e+00 : f32
    %29 = vector.broadcast %cst_16 : f32 to vector<3x384xf32>
    %30 = arith.addf %29, %28 : vector<3x384xf32>
    %cst_17 = arith.constant 1.000000e+00 : f32
    %31 = vector.broadcast %cst_17 : f32 to vector<3x384xf32>
    %32 = arith.divf %31, %30 : vector<3x384xf32>
    %c0_i32 = arith.constant 0 : i32
    %33 = vector.broadcast %c0_i32 : i32 to vector<3x384xi32>
    %34 = arith.cmpi eq, %13, %33 : vector<3x384xi32>
    %c1_i32 = arith.constant 1 : i32
    %35 = vector.broadcast %c1_i32 : i32 to vector<3x384xi32>
    %36 = arith.cmpi eq, %13, %35 : vector<3x384xi32>
    %cst_18 = arith.constant 9.99999974E-6 : f32
    %cst_19 = arith.constant 1.000000e+01 : f32
    %37 = vector.broadcast %cst_18 : f32 to vector<3x384xf32>
    %38 = arith.maximumf %37, %21 : vector<3x384xf32>
    %39 = vector.broadcast %cst_19 : f32 to vector<3x384xf32>
    %40 = arith.minimumf %39, %38 : vector<3x384xf32>
    %cst_20 = arith.constant 9.99999974E-5 : f32
    %cst_21 = arith.constant 1.000000e+01 : f32
    %41 = vector.broadcast %cst_20 : f32 to vector<3x384xf32>
    %42 = arith.maximumf %41, %21 : vector<3x384xf32>
    %43 = vector.broadcast %cst_21 : f32 to vector<3x384xf32>
    %44 = arith.minimumf %43, %42 : vector<3x384xf32>
    %45 = arith.select %36, %40, %44 : vector<3x384xi1>, vector<3x384xf32>
    %46 = arith.select %34, %32, %45 : vector<3x384xi1>, vector<3x384xf32>
    %c0_22 = arith.constant 0 : index
    %c0_23 = arith.constant 0 : index
    %47 = vector.load %arg6[%c0_22, %c0_23] : memref<3x384xf32, #tpu.memory_space<vmem>>, vector<3x384xf32>
    tpu.vector_store %arg6[%c0_22, %c0_23], %46 {strides = array<i32>} : memref<3x384xf32, #tpu.memory_space<vmem>>, vector<3x384xf32>,
    return
  }
  func.func @transform_0(%arg0: i32) -> (i32, i32) {
    %c0_i32 = arith.constant 0 : i32
    %c0_i32_0 = arith.constant 0 : i32
    return %arg0, %c0_i32 : i32, i32
  }
  func.func @transform_1(%arg0: i32) -> (i32, i32) {
    %c0_i32 = arith.constant 0 : i32
    %c0_i32_0 = arith.constant 0 : i32
    %c0_i32_1 = arith.constant 0 : i32
    return %c0_i32, %c0_i32_0 : i32, i32
  }
  func.func @transform_2(%arg0: i32) -> (i32, i32) {
    %c0_i32 = arith.constant 0 : i32
    %c0_i32_0 = arith.constant 0 : i32
    %c0_i32_1 = arith.constant 0 : i32
    return %c0_i32, %c0_i32_0 : i32, i32
  }
  func.func @transform_3(%arg0: i32) -> (i32, i32) {
    %c0_i32 = arith.constant 0 : i32
    %c0_i32_0 = arith.constant 0 : i32
    %c0_i32_1 = arith.constant 0 : i32
    return %c0_i32, %c0_i32_0 : i32, i32
  }
  func.func @transform_4(%arg0: i32) -> (i32, i32) {
    %c0_i32 = arith.constant 0 : i32
    %c0_i32_0 = arith.constant 0 : i32
    %c0_i32_1 = arith.constant 0 : i32
    return %c0_i32, %c0_i32_0 : i32, i32
  }
  func.func @transform_5(%arg0: i32) -> (i32, i32) {
    %c0_i32 = arith.constant 0 : i32
    %c0_i32_0 = arith.constant 0 : i32
    return %c0_i32, %arg0 : i32, i32
  }
}

</mosaic_0001>

<llo_original>
// kernel: tpu_custom_call.1
$region0: #{tpu_custom_call.1}
  #allocation0 [shape = 'u32[]', space=smem, size = 0x4, offset = 0x4, fixed_abs, tag = 'smem constant byte address 0x4 - core index']
  #allocation1 [shape = 'u32[144,128]{1,0:T(1,128)}', space=vmem, size = 0x12000, scoped, tag = 'internal scratch']
  %s0 = inlined_call_operand.hbm [shape: bf16[384,128], index: 0, kind: input, shape index: {}]
  %s1 = inlined_call_operand.hbm [shape: bf16[128,128], index: 1, kind: input, shape index: {}]
  %s2 = inlined_call_operand.vmem [shape: f32[1,128], index: 2, kind: input, shape index: {}]
  %s3 = inlined_call_operand.vmem [shape: f32[3,128], index: 3, kind: input, shape index: {}]
  %s4 = inlined_call_operand.vmem [shape: f32[3,1], index: 4, kind: input, shape index: {}]
  %s5 = inlined_call_operand.hbm [shape: f32[3,384], index: 5, kind: output, shape index: {}]
  %s6 = sld [smem:[#allocation0]]
  $region38: #{tpu_custom_call.1} parent=0
    _
  %s8 = ssub.s32 1, %s6
  %s9 = scalar_select 0, %s8, %s6
  $region1: #{tpu_custom_call.1} parent=0
    #allocation2 [shape = 'u8[98304]{0}', space=vmem, size = 0x18000, scoped, tag = 'input window, operand 0, single buffered']
    #allocation3 [shape = 's32[1]{0}', space=sflag, size = 0x4, scoped, tag = 'scoped memory for tpu_custom_call.1']
    #allocation4 [shape = 's32[1]{0}', space=sflag, size = 0x4, scoped, tag = 'scoped memory for tpu_custom_call.1']
    #allocation5 [shape = 'u8[32768]{0}', space=vmem, size = 0x8000, scoped, tag = 'input window, operand 1, single buffered']
    #allocation6 [shape = 's32[1]{0}', space=sflag, size = 0x4, scoped, tag = 'scoped memory for tpu_custom_call.1']
    #allocation7 [shape = 'u8[6144]{0}', space=vmem, size = 0x1800, scoped, tag = 'output window, operand 0, single buffered']
    %10 = vsyncpa [#allocation3], 0
    %11 = vsyncpa [#allocation6], 0
    %12 = vsyncpa [#allocation4], 0
    // Predicated region
    $region2: #{tpu_custom_call.1} parent=1 // pred_check
      _
    $region3: #{tpu_custom_call.1} parent=1 // pred_check_branch
      %14 = sbr.rel (0) target = $region5
    $region4: #{tpu_custom_call.1} parent=1 // pred_region
      %s16 = ssub.s32 3072, 3072
      %17 = vsyncadd [#allocation3], %s16
      %s18 = sshll.u32 [#allocation2], 4
      %s19 = int_to_ptr.vmem [resolvable:$true] %s18
      %24 = dma.hbm_to_vmem [thread:$0]  %s0, 3072, %s19, [#allocation3], 64, 64, 4
    $region5: #{tpu_custom_call.1} parent=1 // pred_fallthru
      _
    // Predicated region
    $region6: #{tpu_custom_call.1} parent=1 // pred_check
      _
    $region7: #{tpu_custom_call.1} parent=1 // pred_check_branch
      %26 = sbr.rel (0) target = $region9
    $region8: #{tpu_custom_call.1} parent=1 // pred_region
      %s28 = ssub.s32 1024, 1024
      %29 = vsyncadd [#allocation6], %s28
      %s30 = sshll.u32 [#allocation5], 4
      %s31 = int_to_ptr.vmem [resolvable:$true] %s30
      %36 = dma.hbm_to_vmem [thread:$0]  %s1, 1024, %s31, [#allocation6], 64, 64, 4
    $region9: #{tpu_custom_call.1} parent=1 // pred_fallthru
      _
    // Predicated region
    $region10: #{tpu_custom_call.1} parent=1 // pred_check
      _
    $region11: #{tpu_custom_call.1} parent=1 // pred_check_branch
      %38 = sbr.rel (0) target = $region13
    $region12: #{tpu_custom_call.1} parent=1 // pred_region
      _
    $region13: #{tpu_custom_call.1} parent=1 // pred_fallthru
      _
    // Predicated region
    $region14: #{tpu_custom_call.1} parent=1 // pred_check
      _
    $region15: #{tpu_custom_call.1} parent=1 // pred_check_branch
      %40 = sbr.rel (0) target = $region17
    $region16: #{tpu_custom_call.1} parent=1 // pred_region
      _
    $region17: #{tpu_custom_call.1} parent=1 // pred_fallthru
      _
    // Predicated region
    $region18: #{tpu_custom_call.1} parent=1 // pred_check
      _
    $region19: #{tpu_custom_call.1} parent=1 // pred_check_branch
      %42 = sbr.rel (0) target = $region21
    $region20: #{tpu_custom_call.1} parent=1 // pred_region
      _
    $region21: #{tpu_custom_call.1} parent=1 // pred_fallthru
      _
    // Predicated region
    $region22: #{tpu_custom_call.1} parent=1 // pred_check
      _
    $region23: #{tpu_custom_call.1} parent=1 // pred_check_branch
      %44 = sbr.rel (0) target = $region25
    $region24: #{tpu_custom_call.1} parent=1 // pred_region
      %45 = dma.done [#allocation3], 3072
    $region25: #{tpu_custom_call.1} parent=1 // pred_fallthru
      _
    // Predicated region
    $region26: #{tpu_custom_call.1} parent=1 // pred_check
      _
    $region27: #{tpu_custom_call.1} parent=1 // pred_check_branch
      %47 = sbr.rel (0) target = $region29
    $region28: #{tpu_custom_call.1} parent=1 // pred_region
      %48 = dma.done [#allocation6], 1024
    $region29: #{tpu_custom_call.1} parent=1 // pred_fallthru
      _
    %v50 = vld [vmem:[#allocation2] sm:$0xf]
    %v51 = vld [vmem:[#allocation2 + $0x4] sm:$0xf]
    %v52 = vld [vmem:[#allocation2 + $0x8] sm:$0xf]
    %v53 = vld [vmem:[#allocation2 + $0xc] sm:$0xf]
    %v54 = vld [vmem:[#allocation2 + $0x10] sm:$0xf]
    %v55 = vld [vmem:[#allocation2 + $0x14] sm:$0xf]
    %v56 = vld [vmem:[#allocation2 + $0x18] sm:$0xf]
    %v57 = vld [vmem:[#allocation2 + $0x1c] sm:$0xf]
    %v58 = vld [vmem:[#allocation2 + $0x20] sm:$0xf]
    %v59 = vld [vmem:[#allocation2 + $0x24] sm:$0xf]
    %v60 = vld [vmem:[#allocation2 + $0x28] sm:$0xf]
    %v61 = vld [vmem:[#allocation2 + $0x2c] sm:$0xf]
    %v62 = vld [vmem:[#allocation2 + $0x30] sm:$0xf]
    %v63 = vld [vmem:[#allocation2 + $0x34] sm:$0xf]
    %v64 = vld [vmem:[#allocation2 + $0x38] sm:$0xf]
    %v65 = vld [vmem:[#allocation2 + $0x3c] sm:$0xf]
    %v66 = vld [vmem:[#allocation2 + $0x40] sm:$0xf]
    %v67 = vld [vmem:[#allocation2 + $0x44] sm:$0xf]
    %v68 = vld [vmem:[#allocation2 + $0x48] sm:$0xf]
    %v69 = vld [vmem:[#allocation2 + $0x4c] sm:$0xf]
    %v70 = vld [vmem:[#allocation2 + $0x50] sm:$0xf]
    %v71 = vld [vmem:[#allocation2 + $0x54] sm:$0xf]
    %v72 = vld [vmem:[#allocation2 + $0x58] sm:$0xf]
    %v73 = vld [vmem:[#allocation2 + $0x5c] sm:$0xf]
    %v74 = vld [vmem:[#allocation2 + $0x60] sm:$0xf]
    %v75 = vld [vmem:[#allocation2 + $0x64] sm:$0xf]
    %v76 = vld [vmem:[#allocation2 + $0x68] sm:$0xf]
    %v77 = vld [vmem:[#allocation2 + $0x6c] sm:$0xf]
    %v78 = vld [vmem:[#allocation2 + $0x70] sm:$0xf]
    %v79 = vld [vmem:[#allocation2 + $0x74] sm:$0xf]
    %v80 = vld [vmem:[#allocation2 + $0x78] sm:$0xf]
    %v81 = vld [vmem:[#allocation2 + $0x7c] sm:$0xf]
    %v82 = vld [vmem:[#allocation2 + $0x80] sm:$0xf]
    %v83 = vld [vmem:[#allocation2 + $0x84] sm:$0xf]
    %v84 = vld [vmem:[#allocation2 + $0x88] sm:$0xf]
    %v85 = vld [vmem:[#allocation2 + $0x8c] sm:$0xf]
    %v86 = vld [vmem:[#allocation2 + $0x90] sm:$0xf]
    %v87 = vld [vmem:[#allocation2 + $0x94] sm:$0xf]
    %v88 = vld [vmem:[#allocation2 + $0x98] sm:$0xf]
    %v89 = vld [vmem:[#allocation2 + $0x9c] sm:$0xf]
    %v90 = vld [vmem:[#allocation2 + $0xa0] sm:$0xf]
    %v91 = vld [vmem:[#allocation2 + $0xa4] sm:$0xf]
    %v92 = vld [vmem:[#allocation2 + $0xa8] sm:$0xf]
    %v93 = vld [vmem:[#allocation2 + $0xac] sm:$0xf]
    %v94 = vld [vmem:[#allocation2 + $0xb0] sm:$0xf]
    %v95 = vld [vmem:[#allocation2 + $0xb4] sm:$0xf]
    %v96 = vld [vmem:[#allocation2 + $0xb8] sm:$0xf]
    %v97 = vld [vmem:[#allocation2 + $0xbc] sm:$0xf]
    %v98 = vld [vmem:[#allocation5] sm:$0xf]
    %v99 = vld [vmem:[#allocation5 + $0x4] sm:$0xf]
    %v100 = vld [vmem:[#allocation5 + $0x8] sm:$0xf]
    %v101 = vld [vmem:[#allocation5 + $0xc] sm:$0xf]
    %v102 = vld [vmem:[#allocation5 + $0x10] sm:$0xf]
    %v103 = vld [vmem:[#allocation5 + $0x14] sm:$0xf]
    %v104 = vld [vmem:[#allocation5 + $0x18] sm:$0xf]
    %v105 = vld [vmem:[#allocation5 + $0x1c] sm:$0xf]
    %v106 = vld [vmem:[#allocation5 + $0x20] sm:$0xf]
    %v107 = vld [vmem:[#allocation5 + $0x24] sm:$0xf]
    %v108 = vld [vmem:[#allocation5 + $0x28] sm:$0xf]
    %v109 = vld [vmem:[#allocation5 + $0x2c] sm:$0xf]
    %v110 = vld [vmem:[#allocation5 + $0x30] sm:$0xf]
    %v111 = vld [vmem:[#allocation5 + $0x34] sm:$0xf]
    %v112 = vld [vmem:[#allocation5 + $0x38] sm:$0xf]
    %v113 = vld [vmem:[#allocation5 + $0x3c] sm:$0xf]
    %v114 = vld [vmem:[%s2] sm:$0x1]
    %v116 = vlaneseq
    %v117 = vshrl.u32 %v116, 7
    %v118 = vsub.s32 0, %v117
    %v119 = vrot.slane %v114, %v118
    %v169 = vunpack.c.l.b16 %v50
    %v170 = vunpack.c.l.b16 %v51
    %v171 = vunpack.c.l.b16 %v52
    %v172 = vunpack.c.l.b16 %v53
    %v173 = vunpack.c.l.b16 %v54
    %v174 = vunpack.c.l.b16 %v55
    %v175 = vunpack.c.l.b16 %v56
    %v176 = vunpack.c.l.b16 %v57
    %v177 = vunpack.c.l.b16 %v58
    %v178 = vunpack.c.l.b16 %v59
    %v179 = vunpack.c.l.b16 %v60
    %v180 = vunpack.c.l.b16 %v61
    %v181 = vunpack.c.l.b16 %v62
    %v182 = vunpack.c.l.b16 %v63
    %v183 = vunpack.c.l.b16 %v64
    %v184 = vunpack.c.l.b16 %v65
    %v185 = vunpack.c.l.b16 %v66
    %v186 = vunpack.c.l.b16 %v67
    %v187 = vunpack.c.l.b16 %v68
    %v188 = vunpack.c.l.b16 %v69
    %v189 = vunpack.c.l.b16 %v70
    %v190 = vunpack.c.l.b16 %v71
    %v191 = vunpack.c.l.b16 %v72
    %v192 = vunpack.c.l.b16 %v73
    %v193 = vunpack.c.l.b16 %v74
    %v194 = vunpack.c.l.b16 %v75
    %v195 = vunpack.c.l.b16 %v76
    %v196 = vunpack.c.l.b16 %v77
    %v197 = vunpack.c.l.b16 %v78
    %v198 = vunpack.c.l.b16 %v79
    %v199 = vunpack.c.l.b16 %v80
    %v200 = vunpack.c.l.b16 %v81
    %v201 = vunpack.c.l.b16 %v82
    %v202 = vunpack.c.l.b16 %v83
    %v203 = vunpack.c.l.b16 %v84
    %v204 = vunpack.c.l.b16 %v85
    %v205 = vunpack.c.l.b16 %v86
    %v206 = vunpack.c.l.b16 %v87
    %v207 = vunpack.c.l.b16 %v88
    %v208 = vunpack.c.l.b16 %v89
    %v209 = vunpack.c.l.b16 %v90
    %v210 = vunpack.c.l.b16 %v91
    %v211 = vunpack.c.l.b16 %v92
    %v212 = vunpack.c.l.b16 %v93
    %v213 = vunpack.c.l.b16 %v94
    %v214 = vunpack.c.l.b16 %v95
    %v215 = vunpack.c.l.b16 %v96
    %v216 = vunpack.c.l.b16 %v97
    %v217 = vpack.c.b16 %v170, %v169
    %v218 = vpack.c.b16 %v172, %v171
    %v219 = vpack.c.b16 %v174, %v173
    %v220 = vpack.c.b16 %v176, %v175
    %v221 = vpack.c.b16 %v178, %v177
    %v222 = vpack.c.b16 %v180, %v179
    %v223 = vpack.c.b16 %v182, %v181
    %v224 = vpack.c.b16 %v184, %v183
    %v225 = vpack.c.b16 %v186, %v185
    %v226 = vpack.c.b16 %v188, %v187
    %v227 = vpack.c.b16 %v190, %v189
    %v228 = vpack.c.b16 %v192, %v191
    %v229 = vpack.c.b16 %v194, %v193
    %v230 = vpack.c.b16 %v196, %v195
    %v231 = vpack.c.b16 %v198, %v197
    %v232 = vpack.c.b16 %v200, %v199
    %v233 = vpack.c.b16 %v202, %v201
    %v234 = vpack.c.b16 %v204, %v203
    %v235 = vpack.c.b16 %v206, %v205
    %v236 = vpack.c.b16 %v208, %v207
    %v237 = vpack.c.b16 %v210, %v209
    %v238 = vpack.c.b16 %v212, %v211
    %v239 = vpack.c.b16 %v214, %v213
    %v240 = vpack.c.b16 %v216, %v215
    %v281 = vunpack.c.l.b16 %v98
    %v282 = vunpack.c.l.b16 %v99
    %v283 = vunpack.c.l.b16 %v100
    %v284 = vunpack.c.l.b16 %v101
    %v285 = vunpack.c.l.b16 %v102
    %v286 = vunpack.c.l.b16 %v103
    %v287 = vunpack.c.l.b16 %v104
    %v288 = vunpack.c.l.b16 %v105
    %v289 = vunpack.c.l.b16 %v106
    %v290 = vunpack.c.l.b16 %v107
    %v291 = vunpack.c.l.b16 %v108
    %v292 = vunpack.c.l.b16 %v109
    %v293 = vunpack.c.l.b16 %v110
    %v294 = vunpack.c.l.b16 %v111
    %v295 = vunpack.c.l.b16 %v112
    %v296 = vunpack.c.l.b16 %v113
    %v297 = vpack.c.b16 %v282, %v281
    %v298 = vpack.c.b16 %v284, %v283
    %v299 = vpack.c.b16 %v286, %v285
    %v300 = vpack.c.b16 %v288, %v287
    %v301 = vpack.c.b16 %v290, %v289
    %v302 = vpack.c.b16 %v292, %v291
    %v303 = vpack.c.b16 %v294, %v293
    %v304 = vpack.c.b16 %v296, %v295
    %313 = vmatprep.subr.bf16.mxu0 0
    %314 = vmatpush1.bf16.msra.mxu0 %v297
    %315 = vmatprep.subr.bf16.mxu0 0
    %316 = vmatpush1.bf16.msra.mxu0 %v298
    %317 = vmatprep.subr.bf16.mxu0 0
    %318 = vmatpush1.bf16.msra.mxu0 %v299
    %319 = vmatprep.subr.bf16.mxu0 0
    %320 = vmatpush1.bf16.msra.mxu0 %v300
    %321 = vmatprep.subr.bf16.mxu0 0
    %322 = vmatpush1.bf16.msra.mxu0 %v301
    %323 = vmatprep.subr.bf16.mxu0 0
    %324 = vmatpush1.bf16.msra.mxu0 %v302
    %325 = vmatprep.subr.bf16.mxu0 0
    %326 = vmatpush1.bf16.msra.mxu0 %v303
    %327 = vmatprep.subr.bf16.mxu0 0
    %328 = vmatpush1.bf16.msra.mxu0 %v304
    %329 = vmatprep.subr.bf16.mxu0 0
    %330 = vmatpush1.bf16.msra.mxu0 0
    %331 = vmatprep.subr.bf16.mxu0 0
    %332 = vmatpush1.bf16.msra.mxu0 0
    %333 = vmatprep.subr.bf16.mxu0 0
    %334 = vmatpush1.bf16.msra.mxu0 0
    %335 = vmatprep.subr.bf16.mxu0 0
    %336 = vmatpush1.bf16.msra.mxu0 0
    %337 = vmatprep.subr.bf16.mxu0 0
    %338 = vmatpush1.bf16.msra.mxu0 0
    %339 = vmatprep.subr.bf16.mxu0 0
    %340 = vmatpush1.bf16.msra.mxu0 0
    %341 = vmatprep.subr.bf16.mxu0 0
    %342 = vmatpush1.bf16.msra.mxu0 0
    %343 = vmatprep.subr.bf16.mxu0 0
    %344 = vmatpush1.bf16.msra.mxu0 0
    %345 = vmatprep.mubr.bf16.mxu0 0
    %346 = vmatmul.mubr.bf16.gmra.mrb[0].mxu0 %v217
    %v347 = vpop.f32.mrb[0].mxu0
    %v348 = vadd.f32 %v119, %v347
    %v349 = vpop.f32.mrb[0].mxu0
    %v350 = vpop.f32.mrb[0].mxu0
    %v351 = vadd.f32 %v119, %v350
    %v352 = vpop.f32.mrb[0].mxu0
    %353 = vmatprep.mubr.bf16.mxu0 0
    %354 = vmatmul.mubr.bf16.gmra.mrb[0].mxu0 %v218
    %v355 = vpop.f32.mrb[0].mxu0
    %v356 = vadd.f32 %v119, %v355
    %v357 = vpop.f32.mrb[0].mxu0
    %v358 = vpop.f32.mrb[0].mxu0
    %v359 = vadd.f32 %v119, %v358
    %v360 = vpop.f32.mrb[0].mxu0
    %361 = vmatprep.mubr.bf16.mxu0 0
    %362 = vmatmul.mubr.bf16.gmra.mrb[0].mxu0 %v219
    %v363 = vpop.f32.mrb[0].mxu0
    %v364 = vadd.f32 %v119, %v363
    %v365 = vpop.f32.mrb[0].mxu0
    %v366 = vpop.f32.mrb[0].mxu0
    %v367 = vadd.f32 %v119, %v366
    %v368 = vpop.f32.mrb[0].mxu0
    %369 = vmatprep.mubr.bf16.mxu0 0
    %370 = vmatmul.mubr.bf16.gmra.mrb[0].mxu0 %v220
    %v371 = vpop.f32.mrb[0].mxu0
    %v372 = vadd.f32 %v119, %v371
    %v373 = vpop.f32.mrb[0].mxu0
    %v374 = vpop.f32.mrb[0].mxu0
    %v375 = vadd.f32 %v119, %v374
    %v376 = vpop.f32.mrb[0].mxu0
    %377 = vmatprep.mubr.bf16.mxu0 0
    %378 = vmatmul.mubr.bf16.gmra.mrb[0].mxu0 %v221
    %v379 = vpop.f32.mrb[0].mxu0
    %v380 = vadd.f32 %v119, %v379
    %v381 = vpop.f32.mrb[0].mxu0
    %v382 = vpop.f32.mrb[0].mxu0
    %v383 = vadd.f32 %v119, %v382
    %v384 = vpop.f32.mrb[0].mxu0
    %385 = vmatprep.mubr.bf16.mxu0 0
    %386 = vmatmul.mubr.bf16.gmra.mrb[0].mxu0 %v222
    %v387 = vpop.f32.mrb[0].mxu0
    %v388 = vadd.f32 %v119, %v387
    %v389 = vpop.f32.mrb[0].mxu0
    %v390 = vpop.f32.mrb[0].mxu0
    %v391 = vadd.f32 %v119, %v390
    %v392 = vpop.f32.mrb[0].mxu0
    %393 = vmatprep.mubr.bf16.mxu0 0
    %394 = vmatmul.mubr.bf16.gmra.mrb[0].mxu0 %v223
    %v395 = vpop.f32.mrb[0].mxu0
    %v396 = vadd.f32 %v119, %v395
    %v397 = vpop.f32.mrb[0].mxu0
    %v398 = vpop.f32.mrb[0].mxu0
    %v399 = vadd.f32 %v119, %v398
    %v400 = vpop.f32.mrb[0].mxu0
    %401 = vmatprep.mubr.bf16.mxu0 0
    %402 = vmatmul.mubr.bf16.gmra.mrb[0].mxu0 %v224
    %v403 = vpop.f32.mrb[0].mxu0
    %v404 = vadd.f32 %v119, %v403
    %v405 = vpop.f32.mrb[0].mxu0
    %v406 = vpop.f32.mrb[0].mxu0
    %v407 = vadd.f32 %v119, %v406
    %v408 = vpop.f32.mrb[0].mxu0
    %409 = vmatprep.mubr.bf16.mxu0 0
    %410 = vmatmul.mubr.bf16.gmra.mrb[0].mxu0 %v225
    %v411 = vpop.f32.mrb[0].mxu0
    %v412 = vadd.f32 %v119, %v411
    %v413 = vpop.f32.mrb[0].mxu0
    %v414 = vpop.f32.mrb[0].mxu0
    %v415 = vadd.f32 %v119, %v414
    %v416 = vpop.f32.mrb[0].mxu0
    %417 = vmatprep.mubr.bf16.mxu0 0
    %418 = vmatmul.mubr.bf16.gmra.mrb[0].mxu0 %v226
    %v419 = vpop.f32.mrb[0].mxu0
    %v420 = vadd.f32 %v119, %v419
    %v421 = vpop.f32.mrb[0].mxu0
    %v422 = vpop.f32.mrb[0].mxu0
    %v423 = vadd.f32 %v119, %v422
    %v424 = vpop.f32.mrb[0].mxu0
    %425 = vmatprep.mubr.bf16.mxu0 0
    %426 = vmatmul.mubr.bf16.gmra.mrb[0].mxu0 %v227
    %v427 = vpop.f32.mrb[0].mxu0
    %v428 = vadd.f32 %v119, %v427
    %v429 = vpop.f32.mrb[0].mxu0
    %v430 = vpop.f32.mrb[0].mxu0
    %v431 = vadd.f32 %v119, %v430
    %v432 = vpop.f32.mrb[0].mxu0
    %433 = vmatprep.mubr.bf16.mxu0 0
    %434 = vmatmul.mubr.bf16.gmra.mrb[0].mxu0 %v228
    %v435 = vpop.f32.mrb[0].mxu0
    %v436 = vadd.f32 %v119, %v435
    %v437 = vpop.f32.mrb[0].mxu0
    %v438 = vpop.f32.mrb[0].mxu0
    %v439 = vadd.f32 %v119, %v438
    %v440 = vpop.f32.mrb[0].mxu0
    %441 = vmatprep.mubr.bf16.mxu0 0
    %442 = vmatmul.mubr.bf16.gmra.mrb[0].mxu0 %v229
    %v443 = vpop.f32.mrb[0].mxu0
    %v444 = vadd.f32 %v119, %v443
    %v445 = vpop.f32.mrb[0].mxu0
    %v446 = vpop.f32.mrb[0].mxu0
    %v447 = vadd.f32 %v119, %v446
    %v448 = vpop.f32.mrb[0].mxu0
    %449 = vmatprep.mubr.bf16.mxu0 0
    %450 = vmatmul.mubr.bf16.gmra.mrb[0].mxu0 %v230
    %v451 = vpop.f32.mrb[0].mxu0
    %v452 = vadd.f32 %v119, %v451
    %v453 = vpop.f32.mrb[0].mxu0
    %v454 = vpop.f32.mrb[0].mxu0
    %v455 = vadd.f32 %v119, %v454
    %v456 = vpop.f32.mrb[0].mxu0
    %457 = vmatprep.mubr.bf16.mxu0 0
    %458 = vmatmul.mubr.bf16.gmra.mrb[0].mxu0 %v231
    %v459 = vpop.f32.mrb[0].mxu0
    %v460 = vadd.f32 %v119, %v459
    %v461 = vpop.f32.mrb[0].mxu0
    %v462 = vpop.f32.mrb[0].mxu0
    %v463 = vadd.f32 %v119, %v462
    %v464 = vpop.f32.mrb[0].mxu0
    %465 = vmatprep.mubr.bf16.mxu0 0
    %466 = vmatmul.mubr.bf16.gmra.mrb[0].mxu0 %v232
    %v467 = vpop.f32.mrb[0].mxu0
    %v468 = vadd.f32 %v119, %v467
    %v469 = vpop.f32.mrb[0].mxu0
    %v470 = vpop.f32.mrb[0].mxu0
    %v471 = vadd.f32 %v119, %v470
    %v472 = vpop.f32.mrb[0].mxu0
    %473 = vmatprep.mubr.bf16.mxu0 0
    %474 = vmatmul.mubr.bf16.gmra.mrb[0].mxu0 %v233
    %v475 = vpop.f32.mrb[0].mxu0
    %v476 = vadd.f32 %v119, %v475
    %v477 = vpop.f32.mrb[0].mxu0
    %v478 = vpop.f32.mrb[0].mxu0
    %v479 = vadd.f32 %v119, %v478
    %v480 = vpop.f32.mrb[0].mxu0
    %481 = vmatprep.mubr.bf16.mxu0 0
    %482 = vmatmul.mubr.bf16.gmra.mrb[0].mxu0 %v234
    %v483 = vpop.f32.mrb[0].mxu0
    %v484 = vadd.f32 %v119, %v483
    %v485 = vpop.f32.mrb[0].mxu0
    %v486 = vpop.f32.mrb[0].mxu0
    %v487 = vadd.f32 %v119, %v486
    %v488 = vpop.f32.mrb[0].mxu0
    %489 = vmatprep.mubr.bf16.mxu0 0
    %490 = vmatmul.mubr.bf16.gmra.mrb[0].mxu0 %v235
    %v491 = vpop.f32.mrb[0].mxu0
    %v492 = vadd.f32 %v119, %v491
    %v493 = vpop.f32.mrb[0].mxu0
    %v494 = vpop.f32.mrb[0].mxu0
    %v495 = vadd.f32 %v119, %v494
    %v496 = vpop.f32.mrb[0].mxu0
    %497 = vmatprep.mubr.bf16.mxu0 0
    %498 = vmatmul.mubr.bf16.gmra.mrb[0].mxu0 %v236
    %v499 = vpop.f32.mrb[0].mxu0
    %v500 = vadd.f32 %v119, %v499
    %v501 = vpop.f32.mrb[0].mxu0
    %v502 = vpop.f32.mrb[0].mxu0
    %v503 = vadd.f32 %v119, %v502
    %v504 = vpop.f32.mrb[0].mxu0
    %505 = vmatprep.mubr.bf16.mxu0 0
    %506 = vmatmul.mubr.bf16.gmra.mrb[0].mxu0 %v237
    %v507 = vpop.f32.mrb[0].mxu0
    %v508 = vadd.f32 %v119, %v507
    %v509 = vpop.f32.mrb[0].mxu0
    %v510 = vpop.f32.mrb[0].mxu0
    %v511 = vadd.f32 %v119, %v510
    %v512 = vpop.f32.mrb[0].mxu0
    %513 = vmatprep.mubr.bf16.mxu0 0
    %514 = vmatmul.mubr.bf16.gmra.mrb[0].mxu0 %v238
    %v515 = vpop.f32.mrb[0].mxu0
    %v516 = vadd.f32 %v119, %v515
    %v517 = vpop.f32.mrb[0].mxu0
    %v518 = vpop.f32.mrb[0].mxu0
    %v519 = vadd.f32 %v119, %v518
    %v520 = vpop.f32.mrb[0].mxu0
    %521 = vmatprep.mubr.bf16.mxu0 0
    %522 = vmatmul.mubr.bf16.gmra.mrb[0].mxu0 %v239
    %v523 = vpop.f32.mrb[0].mxu0
    %v524 = vadd.f32 %v119, %v523
    %v525 = vpop.f32.mrb[0].mxu0
    %v526 = vpop.f32.mrb[0].mxu0
    %v527 = vadd.f32 %v119, %v526
    %v528 = vpop.f32.mrb[0].mxu0
    %529 = vmatprep.mubr.bf16.mxu0 0
    %530 = vmatmul.mubr.bf16.gmra.mrb[0].mxu0 %v240
    %v531 = vpop.f32.mrb[0].mxu0
    %v532 = vadd.f32 %v119, %v531
    %v533 = vpop.f32.mrb[0].mxu0
    %v534 = vpop.f32.mrb[0].mxu0
    %v535 = vadd.f32 %v119, %v534
    %v536 = vpop.f32.mrb[0].mxu0
    %537 = vdwg.mxu0
    %v538 = vmax.f32 %v348, 0.0
    %v539 = vmax.f32 %v351, 0.0
    %v540 = vmax.f32 %v356, 0.0
    %v541 = vmax.f32 %v359, 0.0
    %v542 = vmax.f32 %v364, 0.0
    %v543 = vmax.f32 %v367, 0.0
    %v544 = vmax.f32 %v372, 0.0
    %v545 = vmax.f32 %v375, 0.0
    %v546 = vmax.f32 %v380, 0.0
    %v547 = vmax.f32 %v383, 0.0
    %v548 = vmax.f32 %v388, 0.0
    %v549 = vmax.f32 %v391, 0.0
    %v550 = vmax.f32 %v396, 0.0
    %v551 = vmax.f32 %v399, 0.0
    %v552 = vmax.f32 %v404, 0.0
    %v553 = vmax.f32 %v407, 0.0
    %v554 = vmax.f32 %v412, 0.0
    %v555 = vmax.f32 %v415, 0.0
    %v556 = vmax.f32 %v420, 0.0
    %v557 = vmax.f32 %v423, 0.0
    %v558 = vmax.f32 %v428, 0.0
    %v559 = vmax.f32 %v431, 0.0
    %v560 = vmax.f32 %v436, 0.0
    %v561 = vmax.f32 %v439, 0.0
    %v562 = vmax.f32 %v444, 0.0
    %v563 = vmax.f32 %v447, 0.0
    %v564 = vmax.f32 %v452, 0.0
    %v565 = vmax.f32 %v455, 0.0
    %v566 = vmax.f32 %v460, 0.0
    %v567 = vmax.f32 %v463, 0.0
    %v568 = vmax.f32 %v468, 0.0
    %v569 = vmax.f32 %v471, 0.0
    %v570 = vmax.f32 %v476, 0.0
    %v571 = vmax.f32 %v479, 0.0
    %v572 = vmax.f32 %v484, 0.0
    %v573 = vmax.f32 %v487, 0.0
    %v574 = vmax.f32 %v492, 0.0
    %v575 = vmax.f32 %v495, 0.0
    %v576 = vmax.f32 %v500, 0.0
    %v577 = vmax.f32 %v503, 0.0
    %v578 = vmax.f32 %v508, 0.0
    %v579 = vmax.f32 %v511, 0.0
    %v580 = vmax.f32 %v516, 0.0
    %v581 = vmax.f32 %v519, 0.0
    %v582 = vmax.f32 %v524, 0.0
    %v583 = vmax.f32 %v527, 0.0
    %v584 = vmax.f32 %v532, 0.0
    %v585 = vmax.f32 %v535, 0.0
    %v586 = vld [vmem:[%s3] sm:$0x7]
    %v587 = vld [vmem:[%s4] sm:$0x7]
    %589 = vset.pattern.permute.xlu0 0
    %590 = vperm.xlu0 %589, %v587
    %v591 = vpop.permute.xlu0 %590
    %593 = vmatprep.subr.mxu0 0.0
    %594 = vmatpush1.xpose.msra.mxu0 %v538
    %595 = vmatprep.subr.mxu0 0.0
    %596 = vmatpush1.xpose.msra.mxu0 %v539
    %597 = vmatprep.subr.mxu0 0.0
    %598 = vmatpush1.xpose.msra.mxu0 %v540
    %599 = vmatprep.subr.mxu0 0.0
    %600 = vmatpush1.xpose.msra.mxu0 %v541
    %601 = vmatprep.subr.mxu0 0.0
    %602 = vmatpush1.xpose.msra.mxu0 %v542
    %603 = vmatprep.subr.mxu0 0.0
    %604 = vmatpush1.xpose.msra.mxu0 %v543
    %605 = vmatprep.subr.mxu0 0.0
    %606 = vmatpush1.xpose.msra.mxu0 %v544
    %607 = vmatprep.subr.mxu0 0.0
    %608 = vmatpush1.xpose.msra.mxu0 %v545
    %609 = vmatprep.subr.mxu0 0.0
    %610 = vmatpush1.xpose.msra.mxu0 %v546
    %611 = vmatprep.subr.mxu0 0.0
    %612 = vmatpush1.xpose.msra.mxu0 %v547
    %613 = vmatprep.subr.mxu0 0.0
    %614 = vmatpush1.xpose.msra.mxu0 %v548
    %615 = vmatprep.subr.mxu0 0.0
    %616 = vmatpush1.xpose.msra.mxu0 %v549
    %617 = vmatprep.subr.mxu0 0.0
    %618 = vmatpush1.xpose.msra.mxu0 %v550
    %619 = vmatprep.subr.mxu0 0.0
    %620 = vmatpush1.xpose.msra.mxu0 %v551
    %621 = vmatprep.subr.mxu0 0.0
    %622 = vmatpush1.xpose.msra.mxu0 %v552
    %623 = vmatprep.subr.mxu0 0.0
    %624 = vmatpush1.xpose.msra.mxu0 %v553
    %625 = vmatprep.subr.mxu0 0.0
    %626 = vmatpush1.xpose.msra.mxu0 %v554
    %627 = vmatprep.subr.mxu0 0.0
    %628 = vmatpush1.xpose.msra.mxu0 %v555
    %629 = vmatprep.subr.mxu0 0.0
    %630 = vmatpush1.xpose.msra.mxu0 %v556
    %631 = vmatprep.subr.mxu0 0.0
    %632 = vmatpush1.xpose.msra.mxu0 %v557
    %633 = vmatprep.subr.mxu0 0.0
    %634 = vmatpush1.xpose.msra.mxu0 %v558
    %635 = vmatprep.subr.mxu0 0.0
    %636 = vmatpush1.xpose.msra.mxu0 %v559
    %637 = vmatprep.subr.mxu0 0.0
    %638 = vmatpush1.xpose.msra.mxu0 %v560
    %639 = vmatprep.subr.mxu0 0.0
    %640 = vmatpush1.xpose.msra.mxu0 %v561
    %641 = vmatprep.subr.mxu0 0.0
    %642 = vmatpush1.xpose.msra.mxu0 %v562
    %643 = vmatprep.subr.mxu0 0.0
    %644 = vmatpush1.xpose.msra.mxu0 %v563
    %645 = vmatprep.subr.mxu0 0.0
    %646 = vmatpush1.xpose.msra.mxu0 %v564
    %647 = vmatprep.subr.mxu0 0.0
    %648 = vmatpush1.xpose.msra.mxu0 %v565
    %649 = vmatprep.subr.mxu0 0.0
    %650 = vmatpush1.xpose.msra.mxu0 %v566
    %651 = vmatprep.subr.mxu0 0.0
    %652 = vmatpush1.xpose.msra.mxu0 %v567
    %653 = vmatprep.subr.mxu0 0.0
    %654 = vmatpush1.xpose.msra.mxu0 %v568
    %655 = vmatprep.subr.mxu0 0.0
    %656 = vmatpush1.xpose.msra.mxu0 %v569
    %657 = vmatprep.mubr.f32.mxu0 0.0
    %658 = vmatmul.mubr.f32.gmra.mrb[0].mxu0 %v586
    %v659 = vpop.f32.mrb[0].mxu0
    %v660 = vadd.f32 %v591, %v659
    %v661 = vpop.f32.mrb[0].mxu0
    %v662 = vadd.f32 %v591, %v661
    %663 = vdwg.mxu0
    %664 = vmatprep.subr.mxu0 0.0
    %665 = vmatpush1.xpose.msra.mxu0 %v570
    %666 = vmatprep.subr.mxu0 0.0
    %667 = vmatpush1.xpose.msra.mxu0 %v571
    %668 = vmatprep.subr.mxu0 0.0
    %669 = vmatpush1.xpose.msra.mxu0 %v572
    %670 = vmatprep.subr.mxu0 0.0
    %671 = vmatpush1.xpose.msra.mxu0 %v573
    %672 = vmatprep.subr.mxu0 0.0
    %673 = vmatpush1.xpose.msra.mxu0 %v574
    %674 = vmatprep.subr.mxu0 0.0
    %675 = vmatpush1.xpose.msra.mxu0 %v575
    %676 = vmatprep.subr.mxu0 0.0
    %677 = vmatpush1.xpose.msra.mxu0 %v576
    %678 = vmatprep.subr.mxu0 0.0
    %679 = vmatpush1.xpose.msra.mxu0 %v577
    %680 = vmatprep.subr.mxu0 0.0
    %681 = vmatpush1.xpose.msra.mxu0 %v578
    %682 = vmatprep.subr.mxu0 0.0
    %683 = vmatpush1.xpose.msra.mxu0 %v579
    %684 = vmatprep.subr.mxu0 0.0
    %685 = vmatpush1.xpose.msra.mxu0 %v580
    %686 = vmatprep.subr.mxu0 0.0
    %687 = vmatpush1.xpose.msra.mxu0 %v581
    %688 = vmatprep.subr.mxu0 0.0
    %689 = vmatpush1.xpose.msra.mxu0 %v582
    %690 = vmatprep.subr.mxu0 0.0
    %691 = vmatpush1.xpose.msra.mxu0 %v583
    %692 = vmatprep.subr.mxu0 0.0
    %693 = vmatpush1.xpose.msra.mxu0 %v584
    %694 = vmatprep.subr.mxu0 0.0
    %695 = vmatpush1.xpose.msra.mxu0 %v585
    %696 = vmatprep.subr.mxu0 0.0
    %697 = vmatpush1.xpose.msra.mxu0 0.0
    %698 = vmatprep.subr.mxu0 0.0
    %699 = vmatpush1.xpose.msra.mxu0 0.0
    %700 = vmatprep.subr.mxu0 0.0
    %701 = vmatpush1.xpose.msra.mxu0 0.0
    %702 = vmatprep.subr.mxu0 0.0
    %703 = vmatpush1.xpose.msra.mxu0 0.0
    %704 = vmatprep.subr.mxu0 0.0
    %705 = vmatpush1.xpose.msra.mxu0 0.0
    %706 = vmatprep.subr.mxu0 0.0
    %707 = vmatpush1.xpose.msra.mxu0 0.0
    %708 = vmatprep.subr.mxu0 0.0
    %709 = vmatpush1.xpose.msra.mxu0 0.0
    %710 = vmatprep.subr.mxu0 0.0
    %711 = vmatpush1.xpose.msra.mxu0 0.0
    %712 = vmatprep.subr.mxu0 0.0
    %713 = vmatpush1.xpose.msra.mxu0 0.0
    %714 = vmatprep.subr.mxu0 0.0
    %715 = vmatpush1.xpose.msra.mxu0 0.0
    %716 = vmatprep.subr.mxu0 0.0
    %717 = vmatpush1.xpose.msra.mxu0 0.0
    %718 = vmatprep.subr.mxu0 0.0
    %719 = vmatpush1.xpose.msra.mxu0 0.0
    %720 = vmatprep.subr.mxu0 0.0
    %721 = vmatpush1.xpose.msra.mxu0 0.0
    %722 = vmatprep.subr.mxu0 0.0
    %723 = vmatpush1.xpose.msra.mxu0 0.0
    %724 = vmatprep.subr.mxu0 0.0
    %725 = vmatpush1.xpose.msra.mxu0 0.0
    %726 = vmatprep.subr.mxu0 0.0
    %727 = vmatpush1.xpose.msra.mxu0 0.0
    %728 = vmatprep.mubr.f32.mxu0 0.0
    %729 = vmatmul.mubr.f32.gmra.mrb[0].mxu0 %v586
    %v730 = vpop.f32.mrb[0].mxu0
    %v731 = vadd.f32 %v591, %v730
    %v732 = vpop.f32.mrb[0].mxu0
    %733 = vdwg.mxu0
    %v734 = vlaneseq
    %v735 = vshrl.u32 %v734, 7
    %v736 = vmax.f32 %v660, 0.0
    %v737 = vmax.f32 %v662, 0.0
    %v738 = vmax.f32 %v731, 0.0
    %v739 = vand.u32 2147483647, %v660
    %v740 = vand.u32 2147483647, %v662
    %v741 = vand.u32 2147483647, %v731
    %v742 = vsub.f32 0.0, %v739
    %v743 = vsub.f32 0.0, %v740
    %v744 = vsub.f32 0.0, %v741
    %v745 = vmul.f32 %v742, 1.442695
    %v746 = vpow.pop %v745
    %v747 = vmul.f32 %v743, 1.442695
    %v748 = vpow.pop %v747
    %v749 = vmul.f32 %v744, 1.442695
    %v750 = vpow.pop %v749
    %v751 = vadd.f32 %v746, 1.0
    %v752 = vlog2.pop %v751
    %v753 = vmul.f32 %v752, 0.6931472
    %v754 = vmul.f32 -0.5, %v746
    %v755 = vadd.f32 %v754, 1.0
    %v756 = vmul.f32 %v755, %v746
    %v757 = vand.u32 2147483647, %v746
    %vm758 = vcmp.lt.f32.partialorder %v757, 0.0004427343
    %v759 = vsel %vm758, %v756, %v753
    %v760 = vadd.f32 %v748, 1.0
    %v761 = vlog2.pop %v760
    %v762 = vmul.f32 %v761, 0.6931472
    %v763 = vmul.f32 -0.5, %v748
    %v764 = vadd.f32 %v763, 1.0
    %v765 = vmul.f32 %v764, %v748
    %v766 = vand.u32 2147483647, %v748
    %vm767 = vcmp.lt.f32.partialorder %v766, 0.0004427343
    %v768 = vsel %vm767, %v765, %v762
    %v769 = vadd.f32 %v750, 1.0
    %v770 = vlog2.pop %v769
    %v771 = vmul.f32 %v770, 0.6931472
    %v772 = vmul.f32 -0.5, %v750
    %v773 = vadd.f32 %v772, 1.0
    %v774 = vmul.f32 %v773, %v750
    %v775 = vand.u32 2147483647, %v750
    %vm776 = vcmp.lt.f32.partialorder %v775, 0.0004427343
    %v777 = vsel %vm776, %v774, %v771
    %v778 = vadd.f32 %v736, %v759
    %v779 = vadd.f32 %v737, %v768
    %v780 = vadd.f32 %v738, %v777
    %v781 = vmax.f32 %v660, -10.0
    %v782 = vmax.f32 %v662, -10.0
    %v783 = vmax.f32 %v731, -10.0
    %v784 = vmin.f32 %v781, 10.0
    %v785 = vmin.f32 %v782, 10.0
    %v786 = vmin.f32 %v783, 10.0
    %v787 = vsub.f32 0.0, %v784
    %v788 = vsub.f32 0.0, %v785
    %v789 = vsub.f32 0.0, %v786
    %v790 = vmul.f32 %v787, 1.442695
    %v791 = vpow.pop %v790
    %v792 = vmul.f32 %v788, 1.442695
    %v793 = vpow.pop %v792
    %v794 = vmul.f32 %v789, 1.442695
    %v795 = vpow.pop %v794
    %v796 = vadd.f32 %v791, 1.0
    %v797 = vadd.f32 %v793, 1.0
    %v798 = vadd.f32 %v795, 1.0
    %v799 = vrcp.pop %v796
    %v800 = vmul.f32 1.0, %v799
    %v801 = vrcp.pop %v797
    %v802 = vmul.f32 1.0, %v801
    %v803 = vrcp.pop %v798
    %v804 = vmul.f32 1.0, %v803
    %vm805 = vcmp.eq.s32.totalorder %v735, 0
    %vm806 = vcmp.eq.s32.totalorder %v735, 1
    %v807 = vmax.f32 %v778, 1e-05
    %v808 = vmax.f32 %v779, 1e-05
    %v809 = vmax.f32 %v780, 1e-05
    %v810 = vmin.f32 %v807, 10.0
    %v811 = vmin.f32 %v808, 10.0
    %v812 = vmin.f32 %v809, 10.0
    %v813 = vmax.f32 %v778, 0.0001
    %v814 = vmax.f32 %v779, 0.0001
    %v815 = vmax.f32 %v780, 0.0001
    %v816 = vmin.f32 %v813, 10.0
    %v817 = vmin.f32 %v814, 10.0
    %v818 = vmin.f32 %v815, 10.0
    %v819 = vsel %vm806, %v810, %v816
    %v820 = vsel %vm806, %v811, %v817
    %v821 = vsel %vm806, %v812, %v818
    %v822 = vsel %vm805, %v800, %v819
    %v823 = vsel %vm805, %v802, %v820
    %v824 = vsel %vm805, %v804, %v821
    %v827 = vcombine.low %v822, %v823
    %829 = vst [vmem:[#allocation7] sm:$0x77] %v827
    %830 = vst [vmem:[#allocation7 + $0x8] sm:$0x7] %v824
    // Predicated region
    $region30: #{tpu_custom_call.1} parent=1 // pred_check
      _
    $region31: #{tpu_custom_call.1} parent=1 // pred_check_branch
      %832 = sbr.rel (0) target = $region33
    $region32: #{tpu_custom_call.1} parent=1 // pred_region
      %s834 = ssub.s32 192, 192
      %835 = vsyncadd [#allocation4], %s834
      %s837 = sshll.u32 [#allocation7], 4
      %s838 = int_to_ptr.vmem [resolvable:$true] %s837
      %840 = dma.vmem_to_hbm [thread:$0]  %s838, 192, %s5, [#allocation4]
    $region33: #{tpu_custom_call.1} parent=1 // pred_fallthru
      _
    // Predicated region
    $region34: #{tpu_custom_call.1} parent=1 // pred_check
      _
    $region35: #{tpu_custom_call.1} parent=1 // pred_check_branch
      %842 = sbr.rel (0) target = $region37
    $region36: #{tpu_custom_call.1} parent=1 // pred_region
      %843 = dma.done [#allocation4], 192
    $region37: #{tpu_custom_call.1} parent=1 // pred_fallthru
      _
    %844 = vsyncpa [#allocation3], 1
    %845 = vsyncpa [#allocation6], 1
    %846 = vsyncpa [#allocation4], 1

</llo_original>
